<compile_context>
chip_gen: v7x
topology: tpu7x:2x2x1
jax: 0.10.0
libtpu: 0.0.40
codegen_flags: <defaults>
</compile_context>

<pallas_src>
import jax
import jax.numpy as jnp
from jax.experimental import pallas as pl
from jax.experimental.pallas import tpu as pltpu


_EPS = 1e-5

# Static row offsets inside the bf16 weight slab (all multiples of 16 so each
# sub-tile starts on a bf16 sublane-tile boundary).
_W2_ROW = 0      # [128, 64]  in lanes [0, 64)
_W3_ROW = 128    # [64, 32]   in lanes [0, 32)
_W4_ROW = 192    # [1, 32]    in lanes [0, 32)
_W1_ROW = 208    # [D, 128]


def _bn_relu(h, gamma, beta, inv_b, mask):
    """Training-mode BatchNorm1d + ReLU with folded affine.

    `mask` is [Bp, 1] with 1.0 on real rows and 0.0 on batch-padding rows.
    Invariant: padded rows of `h` are exactly zero (zero-padded x and no
    pre-BN bias), so they contribute nothing to the mean; the centered term
    is re-masked so they contribute nothing to the variance either, and the
    output is re-masked so the invariant holds for the next layer's matmul.
    """
    mean = jnp.sum(h, axis=0, keepdims=True) * inv_b
    d = (h - mean) * mask                              # shifted (two-pass) stats
    var = jnp.sum(d * d, axis=0, keepdims=True) * inv_b
    scale = gamma * jax.lax.rsqrt(var + _EPS)
    return jnp.maximum(d * scale + beta, 0.0) * mask


def _make_kernel(b_real, input_dim):
    """Build the kernel closure for a (static) real batch size / input dim."""
    inv_b = 1.0 / b_real

    def mlp_kernel(x_ref, w_ref, v_ref, out_ref):
        bp = x_ref.shape[0]

        # ---- unpack parameters at static offsets ----------------------------
        w2 = w_ref[_W2_ROW:_W2_ROW + 128, 0:64]
        w3 = w_ref[_W3_ROW:_W3_ROW + 64, 0:32]
        w4 = w_ref[_W4_ROW:_W4_ROW + 1, 0:32]                  # [1, 32] bf16
        w1 = w_ref[_W1_ROW:_W1_ROW + input_dim, :]             # [D, 128] bf16

        vec = v_ref[...]                                        # [8, 128] f32
        g1, be1 = vec[0:1, :], vec[1:2, :]
        g2, be2 = vec[2:3, 0:64], vec[3:4, 0:64]
        g3, be3 = vec[4:5, 0:32], vec[5:6, 0:32]
        b4 = vec[6:7, 0:1]                                      # [1, 1]

        # Row-validity mask for the padded batch (real rows < b_real).
        row = jax.lax.broadcasted_iota(jnp.int32, (bp, 1), 0)
        mask = (row < b_real).astype(jnp.float32)

        # ---- fc1 -> bn1 -> relu (pre-BN bias cancels under batch-stat BN) ---
        x = x_ref[...].astype(jnp.bfloat16)                     # bf16 MXU operand
        h = jnp.dot(x, w1, preferred_element_type=jnp.float32)
        h = _bn_relu(h, g1, be1, inv_b, mask)

        # ---- fc2 -> bn2 -> relu ----------------------------------------------
        h = jnp.dot(h.astype(jnp.bfloat16), w2, preferred_element_type=jnp.float32)
        h = _bn_relu(h, g2, be2, inv_b, mask)

        # ---- fc3 -> bn3 -> relu ----------------------------------------------
        h = jnp.dot(h.astype(jnp.bfloat16), w3, preferred_element_type=jnp.float32)
        h = _bn_relu(h, g3, be3, inv_b, mask)

        # ---- fc4 -> sigmoid, lane-dense [1, Bp] output (bf16 MXU, f32 acc) ----
        z = jax.lax.dot_general(
            w4, h.astype(jnp.bfloat16),
            (((1,), (1,)), ((), ())),
            preferred_element_type=jnp.float32) + b4
        out_ref[...] = jax.nn.sigmoid(z)

    return mlp_kernel


def pack_params(params):
    """Pack parameters into two slabs. Call ONCE at init time (hoisted out of
    the per-inference path); pass the returned slabs to binary_classifier_v3.
    """
    d = params["w1"].shape[0]
    wpack = jnp.zeros((_W1_ROW + d, 128), jnp.float32)
    wpack = wpack.at[_W2_ROW:_W2_ROW + 128, 0:64].set(params["w2"])
    wpack = wpack.at[_W3_ROW:_W3_ROW + 64, 0:32].set(params["w3"])
    wpack = wpack.at[_W4_ROW, 0:32].set(params["w4"][:, 0])
    wpack = wpack.at[_W1_ROW:_W1_ROW + d, :].set(params["w1"])
    wpack = wpack.astype(jnp.bfloat16)

    vpack = jnp.zeros((8, 128), jnp.float32)
    vpack = vpack.at[0, :].set(params["g1"][0])
    vpack = vpack.at[1, :].set(params["be1"][0])
    vpack = vpack.at[2, :64].set(params["g2"][0])
    vpack = vpack.at[3, :64].set(params["be2"][0])
    vpack = vpack.at[4, :32].set(params["g3"][0])
    vpack = vpack.at[5, :32].set(params["be3"][0])
    vpack = vpack.at[6, 0].set(params["b4"][0, 0])
    return wpack, vpack


def _vmem_limit_bytes(bp, d):
    """Explicit scoped-VMEM request: working set (f32 + bf16 activation copies
    + slabs) with 2x headroom, clamped to [4 MiB, 64 MiB] (v7x physical)."""
    act = bp * (d + 128 + 64 + 32) * 6 + bp * 8
    slabs = (_W1_ROW + d) * 128 * 2 + 8 * 128 * 4
    need = 2 * (act + slabs) + (1 << 20)
    return int(min(max(need, 4 << 20), 64 << 20))


@jax.jit
def binary_classifier_v3(x, wpack, vpack):
    """x: [B, input_dim] float32. wpack/vpack: slabs from pack_params()."""
    b, d = x.shape
    bp = ((b + 127) // 128) * 128          # pad batch to a lane multiple
    x_p = jnp.pad(x, ((0, bp - b), (0, 0)))  # zero rows -> BN stats unaffected

    out = pl.pallas_call(
        _make_kernel(b, d),
        out_shape=jax.ShapeDtypeStruct((1, bp), jnp.float32),
        in_specs=[pl.BlockSpec(memory_space=pltpu.VMEM)] * 3,
        out_specs=pl.BlockSpec(memory_space=pltpu.VMEM),
        compiler_params=pltpu.CompilerParams(
            vmem_limit_bytes=_vmem_limit_bytes(bp, d)),
    )(x_p, wpack, vpack)
    return out[0, :b].reshape(b, 1)


def init_params(key, input_dim):
    """Deterministic synthetic parameters matching PyTorch module shapes.

    nn.Linear(in, out) weight is [out, in]; we store the transpose [in, out]
    so the kernel does x @ W. BatchNorm gamma=1, beta=0 (PyTorch default).
    b1..b3 are generated for shape completeness but cancel exactly under
    training-mode BN and are not packed into the kernel slabs.
    """
    dims = [(input_dim, 128), (128, 64), (64, 32), (32, 1)]
    keys = jax.random.split(key, 2 * len(dims))
    params = {}
    for i, (din, dout) in enumerate(dims):
        bound = 1.0 / jnp.sqrt(din)
        w = jax.random.uniform(keys[2 * i], (din, dout), jnp.float32, -bound, bound)
        bvec = jax.random.uniform(keys[2 * i + 1], (1, dout), jnp.float32, -bound, bound)
        params[f"w{i + 1}"] = w
        params[f"b{i + 1}"] = bvec
    for i, dout in enumerate([128, 64, 32]):
        params[f"g{i + 1}"] = jnp.ones((1, dout), jnp.float32)
        params[f"be{i + 1}"] = jnp.zeros((1, dout), jnp.float32)
    return params


if __name__ == "__main__":
    key = jax.random.PRNGKey(0)
    k_x, k_p = jax.random.split(key)

    batch = 8
    input_dim = 16
    x = jax.random.normal(k_x, (batch, input_dim), jnp.float32)
    params = init_params(k_p, input_dim)

    # Pack ONCE at init time (hoisted out of the per-call path).
    wpack, vpack = jax.block_until_ready(pack_params(params))

    out = binary_classifier_v3(x, wpack, vpack)
    out = jax.block_until_ready(out)

    assert out.shape == (batch, 1)
    assert bool(jnp.all(jnp.isfinite(out)))
    assert bool(jnp.all((out >= 0.0) & (out <= 1.0)))
    print("KERNEL_OK")
</pallas_src>

<mosaic_0001>
module attributes {stable_mosaic.version = 11 : i64} {
  func.func @mlp_kernel(%arg0: memref<128x16xf32, #tpu.memory_space<vmem>>, %arg1: memref<224x128xbf16, #tpu.memory_space<vmem>>, %arg2: memref<8x128xf32, #tpu.memory_space<vmem>>, %arg3: memref<1x128xf32, #tpu.memory_space<vmem>>) attributes {dimension_semantics = [], scalar_prefetch = 0 : i64, scratch_operands = 0 : i64, tpu.core_type = #tpu.core_type<tc>} {
    %c0 = arith.constant 0 : index
    %c0_0 = arith.constant 0 : index
    %0 = vector.load %arg1[%c0, %c0_0] : memref<224x128xbf16, #tpu.memory_space<vmem>>, vector<128x64xbf16>
    %c128 = arith.constant 128 : index
    %c0_1 = arith.constant 0 : index
    %1 = vector.load %arg1[%c128, %c0_1] : memref<224x128xbf16, #tpu.memory_space<vmem>>, vector<64x32xbf16>
    %c192 = arith.constant 192 : index
    %c0_2 = arith.constant 0 : index
    %2 = vector.load %arg1[%c192, %c0_2] : memref<224x128xbf16, #tpu.memory_space<vmem>>, vector<1x32xbf16>
    %c208 = arith.constant 208 : index
    %c0_3 = arith.constant 0 : index
    %3 = vector.load %arg1[%c208, %c0_3] : memref<224x128xbf16, #tpu.memory_space<vmem>>, vector<16x128xbf16>
    %c0_4 = arith.constant 0 : index
    %c0_5 = arith.constant 0 : index
    %4 = vector.load %arg2[%c0_4, %c0_5] : memref<8x128xf32, #tpu.memory_space<vmem>>, vector<8x128xf32>
    %5 = vector.extract_strided_slice %4 {offsets = [0, 0], sizes = [1, 128], strides = [1, 1]} : vector<8x128xf32> to vector<1x128xf32>
    %6 = vector.extract_strided_slice %4 {offsets = [1, 0], sizes = [1, 128], strides = [1, 1]} : vector<8x128xf32> to vector<1x128xf32>
    %7 = vector.extract_strided_slice %4 {offsets = [2, 0], sizes = [1, 64], strides = [1, 1]} : vector<8x128xf32> to vector<1x64xf32>
    %8 = vector.extract_strided_slice %4 {offsets = [3, 0], sizes = [1, 64], strides = [1, 1]} : vector<8x128xf32> to vector<1x64xf32>
    %9 = vector.extract_strided_slice %4 {offsets = [4, 0], sizes = [1, 32], strides = [1, 1]} : vector<8x128xf32> to vector<1x32xf32>
    %10 = vector.extract_strided_slice %4 {offsets = [5, 0], sizes = [1, 32], strides = [1, 1]} : vector<8x128xf32> to vector<1x32xf32>
    %11 = vector.extract_strided_slice %4 {offsets = [6, 0], sizes = [1, 1], strides = [1, 1]} : vector<8x128xf32> to vector<1x1xf32>
    %12 = tpu.iota {dimensions = array<i32: 0>} : vector<128x1xi32>
    %c8_i32 = arith.constant 8 : i32
    %13 = vector.broadcast %c8_i32 : i32 to vector<128x1xi32>
    %14 = arith.cmpi slt, %12, %13 : vector<128x1xi32>
    %15 = arith.extui %14 : vector<128x1xi1> to vector<128x1xi32>
    %16 = arith.sitofp %15 : vector<128x1xi32> to vector<128x1xf32>
    %c0_6 = arith.constant 0 : index
    %c0_7 = arith.constant 0 : index
    %17 = vector.load %arg0[%c0_6, %c0_7] : memref<128x16xf32, #tpu.memory_space<vmem>>, vector<128x16xf32>
    %18 = arith.truncf %17 : vector<128x16xf32> to vector<128x16xbf16>
    %cst = arith.constant dense<0.000000e+00> : vector<128x128xf32>
    %19 = tpu.matmul %18, %3, %cst {dimension_numbers = #tpu.dot_dimension_numbers<[1], [0], [0], [1], [0, 0, 1, 1], [], []>} : vector<128x16xbf16>, vector<16x128xbf16>, vector<128x128xf32> -> vector<128x128xf32>
    %cst_8 = arith.constant dense<0.000000e+00> : vector<128xf32>
    %20 = vector.multi_reduction <add>, %19, %cst_8 [0] : vector<128x128xf32> to vector<128xf32>
    %21 = vector.shape_cast %20 : vector<128xf32> to vector<1x128xf32>
    %cst_9 = arith.constant 1.250000e-01 : f32
    %22 = vector.broadcast %cst_9 : f32 to vector<1x128xf32>
    %23 = arith.mulf %21, %22 : vector<1x128xf32>
    %24 = vector.broadcast %23 : vector<1x128xf32> to vector<128x128xf32>
    %25 = arith.subf %19, %24 : vector<128x128xf32>
    %26 = vector.broadcast %16 : vector<128x1xf32> to vector<128x128xf32>
    %27 = arith.mulf %25, %26 : vector<128x128xf32>
    %28 = arith.mulf %27, %27 : vector<128x128xf32>
    %cst_10 = arith.constant dense<0.000000e+00> : vector<128xf32>
    %29 = vector.multi_reduction <add>, %28, %cst_10 [0] : vector<128x128xf32> to vector<128xf32>
    %30 = vector.shape_cast %29 : vector<128xf32> to vector<1x128xf32>
    %cst_11 = arith.constant 1.250000e-01 : f32
    %31 = vector.broadcast %cst_11 : f32 to vector<1x128xf32>
    %32 = arith.mulf %30, %31 : vector<1x128xf32>
    %cst_12 = arith.constant 9.99999974E-6 : f32
    %33 = vector.broadcast %cst_12 : f32 to vector<1x128xf32>
    %34 = arith.addf %32, %33 : vector<1x128xf32>
    %35 = math.rsqrt %34 : vector<1x128xf32>
    %36 = arith.mulf %5, %35 : vector<1x128xf32>
    %37 = vector.broadcast %36 : vector<1x128xf32> to vector<128x128xf32>
    %38 = arith.mulf %27, %37 : vector<128x128xf32>
    %39 = vector.broadcast %6 : vector<1x128xf32> to vector<128x128xf32>
    %40 = arith.addf %38, %39 : vector<128x128xf32>
    %cst_13 = arith.constant 0.000000e+00 : f32
    %41 = vector.broadcast %cst_13 : f32 to vector<128x128xf32>
    %42 = arith.maximumf %40, %41 : vector<128x128xf32>
    %43 = vector.broadcast %16 : vector<128x1xf32> to vector<128x128xf32>
    %44 = arith.mulf %42, %43 : vector<128x128xf32>
    %45 = arith.truncf %44 : vector<128x128xf32> to vector<128x128xbf16>
    %cst_14 = arith.constant dense<0.000000e+00> : vector<128x64xf32>
    %46 = tpu.matmul %45, %0, %cst_14 {dimension_numbers = #tpu.dot_dimension_numbers<[1], [0], [0], [1], [0, 0, 1, 1], [], []>} : vector<128x128xbf16>, vector<128x64xbf16>, vector<128x64xf32> -> vector<128x64xf32>
    %cst_15 = arith.constant dense<0.000000e+00> : vector<64xf32>
    %47 = vector.multi_reduction <add>, %46, %cst_15 [0] : vector<128x64xf32> to vector<64xf32>
    %48 = vector.shape_cast %47 : vector<64xf32> to vector<1x64xf32>
    %cst_16 = arith.constant 1.250000e-01 : f32
    %49 = vector.broadcast %cst_16 : f32 to vector<1x64xf32>
    %50 = arith.mulf %48, %49 : vector<1x64xf32>
    %51 = vector.broadcast %50 : vector<1x64xf32> to vector<128x64xf32>
    %52 = arith.subf %46, %51 : vector<128x64xf32>
    %53 = vector.broadcast %16 : vector<128x1xf32> to vector<128x64xf32>
    %54 = arith.mulf %52, %53 : vector<128x64xf32>
    %55 = arith.mulf %54, %54 : vector<128x64xf32>
    %cst_17 = arith.constant dense<0.000000e+00> : vector<64xf32>
    %56 = vector.multi_reduction <add>, %55, %cst_17 [0] : vector<128x64xf32> to vector<64xf32>
    %57 = vector.shape_cast %56 : vector<64xf32> to vector<1x64xf32>
    %cst_18 = arith.constant 1.250000e-01 : f32
    %58 = vector.broadcast %cst_18 : f32 to vector<1x64xf32>
    %59 = arith.mulf %57, %58 : vector<1x64xf32>
    %cst_19 = arith.constant 9.99999974E-6 : f32
    %60 = vector.broadcast %cst_19 : f32 to vector<1x64xf32>
    %61 = arith.addf %59, %60 : vector<1x64xf32>
    %62 = math.rsqrt %61 : vector<1x64xf32>
    %63 = arith.mulf %7, %62 : vector<1x64xf32>
    %64 = vector.broadcast %63 : vector<1x64xf32> to vector<128x64xf32>
    %65 = arith.mulf %54, %64 : vector<128x64xf32>
    %66 = vector.broadcast %8 : vector<1x64xf32> to vector<128x64xf32>
    %67 = arith.addf %65, %66 : vector<128x64xf32>
    %cst_20 = arith.constant 0.000000e+00 : f32
    %68 = vector.broadcast %cst_20 : f32 to vector<128x64xf32>
    %69 = arith.maximumf %67, %68 : vector<128x64xf32>
    %70 = vector.broadcast %16 : vector<128x1xf32> to vector<128x64xf32>
    %71 = arith.mulf %69, %70 : vector<128x64xf32>
    %72 = arith.truncf %71 : vector<128x64xf32> to vector<128x64xbf16>
    %cst_21 = arith.constant dense<0.000000e+00> : vector<128x32xf32>
    %73 = tpu.matmul %72, %1, %cst_21 {dimension_numbers = #tpu.dot_dimension_numbers<[1], [0], [0], [1], [0, 0, 1, 1], [], []>} : vector<128x64xbf16>, vector<64x32xbf16>, vector<128x32xf32> -> vector<128x32xf32>
    %cst_22 = arith.constant dense<0.000000e+00> : vector<32xf32>
    %74 = vector.multi_reduction <add>, %73, %cst_22 [0] : vector<128x32xf32> to vector<32xf32>
    %75 = vector.shape_cast %74 : vector<32xf32> to vector<1x32xf32>
    %cst_23 = arith.constant 1.250000e-01 : f32
    %76 = vector.broadcast %cst_23 : f32 to vector<1x32xf32>
    %77 = arith.mulf %75, %76 : vector<1x32xf32>
    %78 = vector.broadcast %77 : vector<1x32xf32> to vector<128x32xf32>
    %79 = arith.subf %73, %78 : vector<128x32xf32>
    %80 = vector.broadcast %16 : vector<128x1xf32> to vector<128x32xf32>
    %81 = arith.mulf %79, %80 : vector<128x32xf32>
    %82 = arith.mulf %81, %81 : vector<128x32xf32>
    %cst_24 = arith.constant dense<0.000000e+00> : vector<32xf32>
    %83 = vector.multi_reduction <add>, %82, %cst_24 [0] : vector<128x32xf32> to vector<32xf32>
    %84 = vector.shape_cast %83 : vector<32xf32> to vector<1x32xf32>
    %cst_25 = arith.constant 1.250000e-01 : f32
    %85 = vector.broadcast %cst_25 : f32 to vector<1x32xf32>
    %86 = arith.mulf %84, %85 : vector<1x32xf32>
    %cst_26 = arith.constant 9.99999974E-6 : f32
    %87 = vector.broadcast %cst_26 : f32 to vector<1x32xf32>
    %88 = arith.addf %86, %87 : vector<1x32xf32>
    %89 = math.rsqrt %88 : vector<1x32xf32>
    %90 = arith.mulf %9, %89 : vector<1x32xf32>
    %91 = vector.broadcast %90 : vector<1x32xf32> to vector<128x32xf32>
    %92 = arith.mulf %81, %91 : vector<128x32xf32>
    %93 = vector.broadcast %10 : vector<1x32xf32> to vector<128x32xf32>
    %94 = arith.addf %92, %93 : vector<128x32xf32>
    %cst_27 = arith.constant 0.000000e+00 : f32
    %95 = vector.broadcast %cst_27 : f32 to vector<128x32xf32>
    %96 = arith.maximumf %94, %95 : vector<128x32xf32>
    %97 = vector.broadcast %16 : vector<128x1xf32> to vector<128x32xf32>
    %98 = arith.mulf %96, %97 : vector<128x32xf32>
    %99 = arith.truncf %98 : vector<128x32xf32> to vector<128x32xbf16>
    %cst_28 = arith.constant dense<0.000000e+00> : vector<1x128xf32>
    %100 = tpu.matmul %2, %99, %cst_28 {dimension_numbers = #tpu.dot_dimension_numbers<[1], [1], [0], [0], [0, 0, 1, 0], [], []>} : vector<1x32xbf16>, vector<128x32xbf16>, vector<1x128xf32> -> vector<1x128xf32>
    %101 = vector.broadcast %11 : vector<1x1xf32> to vector<1x128xf32>
    %102 = arith.addf %100, %101 : vector<1x128xf32>
    %103 = arith.negf %102 : vector<1x128xf32>
    %104 = math.exp %103 : vector<1x128xf32>
    %cst_29 = arith.constant 1.000000e+00 : f32
    %105 = vector.broadcast %cst_29 : f32 to vector<1x128xf32>
    %106 = arith.addf %105, %104 : vector<1x128xf32>
    %107 = arith.divf %105, %106 : vector<1x128xf32>
    %c0_30 = arith.constant 0 : index
    %c0_31 = arith.constant 0 : index
    %108 = vector.load %arg3[%c0_30, %c0_31] : memref<1x128xf32, #tpu.memory_space<vmem>>, vector<1x128xf32>
    tpu.vector_store %arg3[%c0_30, %c0_31], %107 {strides = array<i32>} : memref<1x128xf32, #tpu.memory_space<vmem>>, vector<1x128xf32>,
    return
  }
}

</mosaic_0001>

<llo_original>
// kernel: binary_classifier_v3.1
$region0: #{binary_classifier_v3.1}
  #allocation0 [shape = 'u32[]', space=smem, size = 0x4, offset = 0x4, fixed_abs, tag = 'smem constant byte address 0x4 - core index']
  #allocation1 [shape = 'u32[144,128]{1,0:T(1,128)}', space=vmem, size = 0x12000, scoped, tag = 'internal scratch']
  %s0 = inlined_call_operand.vmem [shape: f32[128,16], index: 0, kind: input, shape index: {}]
  %s1 = inlined_call_operand.vmem [shape: bf16[224,128], index: 1, kind: input, shape index: {}]
  %s2 = inlined_call_operand.vmem [shape: f32[8,128], index: 2, kind: input, shape index: {}]
  %s3 = inlined_call_operand.vmem [shape: f32[1,128], index: 3, kind: output, shape index: {}]
  %s4 = sld [smem:[#allocation0]]
  $region22: #{binary_classifier_v3.1} parent=0
    _
  %s6 = ssub.s32 1, %s4
  %s7 = scalar_select 0, %s6, %s4
  // Predicated region
  $region2: #{binary_classifier_v3.1} parent=0 // pred_check
    _
  $region3: #{binary_classifier_v3.1} parent=0 // pred_check_branch
    %9 = sbr.rel (0) target = $region5
  $region4: #{binary_classifier_v3.1} parent=0 // pred_region
    _
  $region5: #{binary_classifier_v3.1} parent=0 // pred_fallthru
    _
  // Predicated region
  $region6: #{binary_classifier_v3.1} parent=0 // pred_check
    _
  $region7: #{binary_classifier_v3.1} parent=0 // pred_check_branch
    %11 = sbr.rel (0) target = $region9
  $region8: #{binary_classifier_v3.1} parent=0 // pred_region
    _
  $region9: #{binary_classifier_v3.1} parent=0 // pred_fallthru
    _
  // Predicated region
  $region10: #{binary_classifier_v3.1} parent=0 // pred_check
    _
  $region11: #{binary_classifier_v3.1} parent=0 // pred_check_branch
    %13 = sbr.rel (0) target = $region13
  $region12: #{binary_classifier_v3.1} parent=0 // pred_region
    _
  $region13: #{binary_classifier_v3.1} parent=0 // pred_fallthru
    _
  %v15 = vld [vmem:[%s1] sm:$0xf]
  %v16 = vld [vmem:[%s1 + $0x4] sm:$0xf]
  %v17 = vld [vmem:[%s1 + $0x8] sm:$0xf]
  %v18 = vld [vmem:[%s1 + $0xc] sm:$0xf]
  %v19 = vld [vmem:[%s1 + $0x10] sm:$0xf]
  %v20 = vld [vmem:[%s1 + $0x14] sm:$0xf]
  %v21 = vld [vmem:[%s1 + $0x18] sm:$0xf]
  %v22 = vld [vmem:[%s1 + $0x1c] sm:$0xf]
  %v23 = vld [vmem:[%s1 + $0x20] sm:$0xf]
  %v24 = vld [vmem:[%s1 + $0x24] sm:$0xf]
  %v25 = vld [vmem:[%s1 + $0x28] sm:$0xf]
  %v26 = vld [vmem:[%s1 + $0x2c] sm:$0xf]
  %v27 = vld [vmem:[%s1 + $0x30] sm:$0xf]
  %v28 = vld [vmem:[%s1 + $0x34] sm:$0xf]
  %v29 = vld [vmem:[%s1 + $0x38] sm:$0xf]
  %v30 = vld [vmem:[%s1 + $0x3c] sm:$0xf]
  %v31 = vld [vmem:[%s1 + $0x40] sm:$0xf]
  %v32 = vld [vmem:[%s1 + $0x44] sm:$0xf]
  %v33 = vld [vmem:[%s1 + $0x48] sm:$0xf]
  %v34 = vld [vmem:[%s1 + $0x4c] sm:$0xf]
  %v35 = vld [vmem:[%s1 + $0x50] sm:$0xf]
  %v36 = vld [vmem:[%s1 + $0x54] sm:$0xf]
  %v37 = vld [vmem:[%s1 + $0x58] sm:$0xf]
  %v38 = vld [vmem:[%s1 + $0x5c] sm:$0xf]
  %v39 = vld [vmem:[%s1 + $0x60] sm:$0x1]
  %v40 = vld [vmem:[%s1 + $0x68] sm:$0xf]
  %v41 = vld [vmem:[%s1 + $0x6c] sm:$0xf]
  %v42 = vld [vmem:[%s2] sm:$0xff]
  %v43 = vlaneseq
  %v44 = vshrl.u32 %v43, 7
  %v45 = vadd.s32 %v44, 8
  %v46 = vadd.s32 %v44, 16
  %v47 = vadd.s32 %v44, 24
  %v48 = vadd.s32 %v44, 32
  %v49 = vadd.s32 %v44, 40
  %v50 = vadd.s32 %v44, 48
  %v51 = vadd.s32 %v44, 56
  %v52 = vadd.s32 %v44, 64
  %v53 = vadd.s32 %v44, 72
  %v54 = vadd.s32 %v44, 80
  %v55 = vadd.s32 %v44, 88
  %v56 = vadd.s32 %v44, 96
  %v57 = vadd.s32 %v44, 104
  %v58 = vadd.s32 %v44, 112
  %v59 = vadd.s32 %v44, 120
  %vm60 = vcmp.lt.s32.totalorder %v44, 8
  %vm61 = vcmp.lt.s32.totalorder %v45, 8
  %vm62 = vcmp.lt.s32.totalorder %v46, 8
  %vm63 = vcmp.lt.s32.totalorder %v47, 8
  %vm64 = vcmp.lt.s32.totalorder %v48, 8
  %vm65 = vcmp.lt.s32.totalorder %v49, 8
  %vm66 = vcmp.lt.s32.totalorder %v50, 8
  %vm67 = vcmp.lt.s32.totalorder %v51, 8
  %vm68 = vcmp.lt.s32.totalorder %v52, 8
  %vm69 = vcmp.lt.s32.totalorder %v53, 8
  %vm70 = vcmp.lt.s32.totalorder %v54, 8
  %vm71 = vcmp.lt.s32.totalorder %v55, 8
  %vm72 = vcmp.lt.s32.totalorder %v56, 8
  %vm73 = vcmp.lt.s32.totalorder %v57, 8
  %vm74 = vcmp.lt.s32.totalorder %v58, 8
  %vm75 = vcmp.lt.s32.totalorder %v59, 8
  %v76 = vsel %vm60, 1, 0
  %v77 = vsel %vm61, 1, 0
  %v78 = vsel %vm62, 1, 0
  %v79 = vsel %vm63, 1, 0
  %v80 = vsel %vm64, 1, 0
  %v81 = vsel %vm65, 1, 0
  %v82 = vsel %vm66, 1, 0
  %v83 = vsel %vm67, 1, 0
  %v84 = vsel %vm68, 1, 0
  %v85 = vsel %vm69, 1, 0
  %v86 = vsel %vm70, 1, 0
  %v87 = vsel %vm71, 1, 0
  %v88 = vsel %vm72, 1, 0
  %v89 = vsel %vm73, 1, 0
  %v90 = vsel %vm74, 1, 0
  %v91 = vsel %vm75, 1, 0
  %v92 = vcvt.s32.f32 %v76
  %v93 = vcvt.s32.f32 %v77
  %v94 = vcvt.s32.f32 %v78
  %v95 = vcvt.s32.f32 %v79
  %v96 = vcvt.s32.f32 %v80
  %v97 = vcvt.s32.f32 %v81
  %v98 = vcvt.s32.f32 %v82
  %v99 = vcvt.s32.f32 %v83
  %v100 = vcvt.s32.f32 %v84
  %v101 = vcvt.s32.f32 %v85
  %v102 = vcvt.s32.f32 %v86
  %v103 = vcvt.s32.f32 %v87
  %v104 = vcvt.s32.f32 %v88
  %v105 = vcvt.s32.f32 %v89
  %v106 = vcvt.s32.f32 %v90
  %v107 = vcvt.s32.f32 %v91
  %v108 = vld [vmem:[%s0] sm:$0xff]
  %v109 = vld [vmem:[%s0 + $0x8] sm:$0xff]
  %v110 = vld [vmem:[%s0 + $0x10] sm:$0xff]
  %v111 = vld [vmem:[%s0 + $0x18] sm:$0xff]
  %v112 = vld [vmem:[%s0 + $0x20] sm:$0xff]
  %v113 = vld [vmem:[%s0 + $0x28] sm:$0xff]
  %v114 = vld [vmem:[%s0 + $0x30] sm:$0xff]
  %v115 = vld [vmem:[%s0 + $0x38] sm:$0xff]
  %v116 = vld [vmem:[%s0 + $0x40] sm:$0xff]
  %v117 = vld [vmem:[%s0 + $0x48] sm:$0xff]
  %v118 = vld [vmem:[%s0 + $0x50] sm:$0xff]
  %v119 = vld [vmem:[%s0 + $0x58] sm:$0xff]
  %v120 = vld [vmem:[%s0 + $0x60] sm:$0xff]
  %v121 = vld [vmem:[%s0 + $0x68] sm:$0xff]
  %v122 = vld [vmem:[%s0 + $0x70] sm:$0xff]
  %v123 = vld [vmem:[%s0 + $0x78] sm:$0xff]
  %v124 = vpack.c.bf16 %v109, %v108
  %v125 = vpack.c.bf16 %v111, %v110
  %v126 = vpack.c.bf16 %v113, %v112
  %v127 = vpack.c.bf16 %v115, %v114
  %v128 = vpack.c.bf16 %v117, %v116
  %v129 = vpack.c.bf16 %v119, %v118
  %v130 = vpack.c.bf16 %v121, %v120
  %v131 = vpack.c.bf16 %v123, %v122
  %v134 = vunpack.c.l.b16 %v40
  %v135 = vunpack.c.l.b16 %v41
  %v136 = vpack.c.b16 %v135, %v134
  %vm138 = vcmask 130048
  %v140 = vsel %vm138, %v124, 0
  %v143 = vsel %vm138, %v125, 0
  %v146 = vsel %vm138, %v126, 0
  %v149 = vsel %vm138, %v127, 0
  %v152 = vsel %vm138, %v128, 0
  %v155 = vsel %vm138, %v129, 0
  %v158 = vsel %vm138, %v130, 0
  %v161 = vsel %vm138, %v131, 0
  %163 = vmatprep.subr.bf16.mxu0 0
  %164 = vmatpush1.bf16.msra.mxu0 %v136
  %165 = vmatprep.subr.bf16.mxu0 0
  %166 = vmatpush1.bf16.msra.mxu0 0
  %167 = vmatprep.subr.bf16.mxu0 0
  %168 = vmatpush1.bf16.msra.mxu0 0
  %169 = vmatprep.subr.bf16.mxu0 0
  %170 = vmatpush1.bf16.msra.mxu0 0
  %171 = vmatprep.subr.bf16.mxu0 0
  %172 = vmatpush1.bf16.msra.mxu0 0
  %173 = vmatprep.subr.bf16.mxu0 0
  %174 = vmatpush1.bf16.msra.mxu0 0
  %175 = vmatprep.subr.bf16.mxu0 0
  %176 = vmatpush1.bf16.msra.mxu0 0
  %177 = vmatprep.subr.bf16.mxu0 0
  %178 = vmatpush1.bf16.msra.mxu0 0
  %179 = vmatprep.subr.bf16.mxu0 0
  %180 = vmatpush1.bf16.msra.mxu0 0
  %181 = vmatprep.subr.bf16.mxu0 0
  %182 = vmatpush1.bf16.msra.mxu0 0
  %183 = vmatprep.subr.bf16.mxu0 0
  %184 = vmatpush1.bf16.msra.mxu0 0
  %185 = vmatprep.subr.bf16.mxu0 0
  %186 = vmatpush1.bf16.msra.mxu0 0
  %187 = vmatprep.subr.bf16.mxu0 0
  %188 = vmatpush1.bf16.msra.mxu0 0
  %189 = vmatprep.subr.bf16.mxu0 0
  %190 = vmatpush1.bf16.msra.mxu0 0
  %191 = vmatprep.subr.bf16.mxu0 0
  %192 = vmatpush1.bf16.msra.mxu0 0
  %193 = vmatprep.subr.bf16.mxu0 0
  %194 = vmatpush1.bf16.msra.mxu0 0
  %195 = vmatprep.mubr.bf16.mxu0 0
  %196 = vmatmul.mubr.bf16.gmra.mrb[0].mxu0 %v140
  %v197 = vpop.f32.mrb[0].mxu0
  %v198 = vadd.f32 0.0, %v197
  %v199 = vpop.f32.mrb[0].mxu0
  %v200 = vpop.f32.mrb[0].mxu0
  %v201 = vadd.f32 0.0, %v200
  %v202 = vpop.f32.mrb[0].mxu0
  %203 = vmatprep.mubr.bf16.mxu0 0
  %204 = vmatmul.mubr.bf16.gmra.mrb[0].mxu0 %v143
  %v205 = vpop.f32.mrb[0].mxu0
  %v206 = vadd.f32 0.0, %v205
  %v207 = vpop.f32.mrb[0].mxu0
  %v208 = vpop.f32.mrb[0].mxu0
  %v209 = vadd.f32 0.0, %v208
  %v210 = vpop.f32.mrb[0].mxu0
  %211 = vmatprep.mubr.bf16.mxu0 0
  %212 = vmatmul.mubr.bf16.gmra.mrb[0].mxu0 %v146
  %v213 = vpop.f32.mrb[0].mxu0
  %v214 = vadd.f32 0.0, %v213
  %v215 = vpop.f32.mrb[0].mxu0
  %v216 = vpop.f32.mrb[0].mxu0
  %v217 = vadd.f32 0.0, %v216
  %v218 = vpop.f32.mrb[0].mxu0
  %219 = vmatprep.mubr.bf16.mxu0 0
  %220 = vmatmul.mubr.bf16.gmra.mrb[0].mxu0 %v149
  %v221 = vpop.f32.mrb[0].mxu0
  %v222 = vadd.f32 0.0, %v221
  %v223 = vpop.f32.mrb[0].mxu0
  %v224 = vpop.f32.mrb[0].mxu0
  %v225 = vadd.f32 0.0, %v224
  %v226 = vpop.f32.mrb[0].mxu0
  %227 = vmatprep.mubr.bf16.mxu0 0
  %228 = vmatmul.mubr.bf16.gmra.mrb[0].mxu0 %v152
  %v229 = vpop.f32.mrb[0].mxu0
  %v230 = vadd.f32 0.0, %v229
  %v231 = vpop.f32.mrb[0].mxu0
  %v232 = vpop.f32.mrb[0].mxu0
  %v233 = vadd.f32 0.0, %v232
  %v234 = vpop.f32.mrb[0].mxu0
  %235 = vmatprep.mubr.bf16.mxu0 0
  %236 = vmatmul.mubr.bf16.gmra.mrb[0].mxu0 %v155
  %v237 = vpop.f32.mrb[0].mxu0
  %v238 = vadd.f32 0.0, %v237
  %v239 = vpop.f32.mrb[0].mxu0
  %v240 = vpop.f32.mrb[0].mxu0
  %v241 = vadd.f32 0.0, %v240
  %v242 = vpop.f32.mrb[0].mxu0
  %243 = vmatprep.mubr.bf16.mxu0 0
  %244 = vmatmul.mubr.bf16.gmra.mrb[0].mxu0 %v158
  %v245 = vpop.f32.mrb[0].mxu0
  %v246 = vadd.f32 0.0, %v245
  %v247 = vpop.f32.mrb[0].mxu0
  %v248 = vpop.f32.mrb[0].mxu0
  %v249 = vadd.f32 0.0, %v248
  %v250 = vpop.f32.mrb[0].mxu0
  %251 = vmatprep.mubr.bf16.mxu0 0
  %252 = vmatmul.mubr.bf16.gmra.mrb[0].mxu0 %v161
  %v253 = vpop.f32.mrb[0].mxu0
  %v254 = vadd.f32 0.0, %v253
  %v255 = vpop.f32.mrb[0].mxu0
  %v256 = vpop.f32.mrb[0].mxu0
  %v257 = vadd.f32 0.0, %v256
  %v258 = vpop.f32.mrb[0].mxu0
  %259 = vdwg.mxu0
  %v260 = vadd.f32 %v198, %v201
  %v261 = vadd.f32 %v260, %v206
  %v262 = vadd.f32 %v261, %v209
  %v263 = vadd.f32 %v262, %v214
  %v264 = vadd.f32 %v263, %v217
  %v265 = vadd.f32 %v264, %v222
  %v266 = vadd.f32 %v265, %v225
  %v267 = vadd.f32 %v266, %v230
  %v268 = vadd.f32 %v267, %v233
  %v269 = vadd.f32 %v268, %v238
  %v270 = vadd.f32 %v269, %v241
  %v271 = vadd.f32 %v270, %v246
  %v272 = vadd.f32 %v271, %v249
  %v273 = vadd.f32 %v272, %v254
  %v274 = vadd.f32 %v273, %v257
  %v275 = vrot.slane %v274, 4
  %v276 = vadd.f32 %v274, %v275
  %v277 = vrot.slane %v276, 2
  %v278 = vadd.f32 %v276, %v277
  %v279 = vrot.slane %v278, 1
  %v280 = vadd.f32 %v278, %v279
  %v281 = vmul.f32 %v280, 0.125
  %v282 = vsub.f32 %v198, %v281
  %v283 = vsub.f32 %v201, %v281
  %v284 = vsub.f32 %v206, %v281
  %v285 = vsub.f32 %v209, %v281
  %v286 = vsub.f32 %v214, %v281
  %v287 = vsub.f32 %v217, %v281
  %v288 = vsub.f32 %v222, %v281
  %v289 = vsub.f32 %v225, %v281
  %v290 = vsub.f32 %v230, %v281
  %v291 = vsub.f32 %v233, %v281
  %v292 = vsub.f32 %v238, %v281
  %v293 = vsub.f32 %v241, %v281
  %v294 = vsub.f32 %v246, %v281
  %v295 = vsub.f32 %v249, %v281
  %v296 = vsub.f32 %v254, %v281
  %v297 = vsub.f32 %v257, %v281
  %v298 = vmul.f32 %v282, %v92
  %v299 = vmul.f32 %v283, %v93
  %v300 = vmul.f32 %v284, %v94
  %v301 = vmul.f32 %v285, %v95
  %v302 = vmul.f32 %v286, %v96
  %v303 = vmul.f32 %v287, %v97
  %v304 = vmul.f32 %v288, %v98
  %v305 = vmul.f32 %v289, %v99
  %v306 = vmul.f32 %v290, %v100
  %v307 = vmul.f32 %v291, %v101
  %v308 = vmul.f32 %v292, %v102
  %v309 = vmul.f32 %v293, %v103
  %v310 = vmul.f32 %v294, %v104
  %v311 = vmul.f32 %v295, %v105
  %v312 = vmul.f32 %v296, %v106
  %v313 = vmul.f32 %v297, %v107
  %v314 = vmul.f32 %v298, %v298
  %v315 = vmul.f32 %v299, %v299
  %v316 = vmul.f32 %v300, %v300
  %v317 = vmul.f32 %v301, %v301
  %v318 = vmul.f32 %v302, %v302
  %v319 = vmul.f32 %v303, %v303
  %v320 = vmul.f32 %v304, %v304
  %v321 = vmul.f32 %v305, %v305
  %v322 = vmul.f32 %v306, %v306
  %v323 = vmul.f32 %v307, %v307
  %v324 = vmul.f32 %v308, %v308
  %v325 = vmul.f32 %v309, %v309
  %v326 = vmul.f32 %v310, %v310
  %v327 = vmul.f32 %v311, %v311
  %v328 = vmul.f32 %v312, %v312
  %v329 = vmul.f32 %v313, %v313
  %v330 = vadd.f32 %v314, %v315
  %v331 = vadd.f32 %v330, %v316
  %v332 = vadd.f32 %v331, %v317
  %v333 = vadd.f32 %v332, %v318
  %v334 = vadd.f32 %v333, %v319
  %v335 = vadd.f32 %v334, %v320
  %v336 = vadd.f32 %v335, %v321
  %v337 = vadd.f32 %v336, %v322
  %v338 = vadd.f32 %v337, %v323
  %v339 = vadd.f32 %v338, %v324
  %v340 = vadd.f32 %v339, %v325
  %v341 = vadd.f32 %v340, %v326
  %v342 = vadd.f32 %v341, %v327
  %v343 = vadd.f32 %v342, %v328
  %v344 = vadd.f32 %v343, %v329
  %v345 = vrot.slane %v344, 4
  %v346 = vadd.f32 %v344, %v345
  %v347 = vrot.slane %v346, 2
  %v348 = vadd.f32 %v346, %v347
  %v349 = vrot.slane %v348, 1
  %v350 = vadd.f32 %v348, %v349
  %v351 = vmul.f32 %v350, 0.125
  %v352 = vadd.f32 %v351, 1e-05
  %v353 = vrsqrt.pop %v352
  %v354 = vmul.f32 %v42, %v353
  %v355 = vlaneseq
  %v356 = vshrl.u32 %v355, 7
  %v357 = vsub.s32 0, %v356
  %v358 = vrot.slane %v354, %v357
  %v359 = vmul.f32 %v298, %v358
  %v360 = vmul.f32 %v299, %v358
  %v361 = vmul.f32 %v300, %v358
  %v362 = vmul.f32 %v301, %v358
  %v363 = vmul.f32 %v302, %v358
  %v364 = vmul.f32 %v303, %v358
  %v365 = vmul.f32 %v304, %v358
  %v366 = vmul.f32 %v305, %v358
  %v367 = vmul.f32 %v306, %v358
  %v368 = vmul.f32 %v307, %v358
  %v369 = vmul.f32 %v308, %v358
  %v370 = vmul.f32 %v309, %v358
  %v371 = vmul.f32 %v310, %v358
  %v372 = vmul.f32 %v311, %v358
  %v373 = vmul.f32 %v312, %v358
  %v374 = vmul.f32 %v313, %v358
  %v375 = vlaneseq
  %v376 = vshrl.u32 %v375, 7
  %v377 = vsub.s32 1, %v376
  %v378 = vrot.slane %v42, %v377
  %v379 = vadd.f32 %v359, %v378
  %v380 = vadd.f32 %v360, %v378
  %v381 = vadd.f32 %v361, %v378
  %v382 = vadd.f32 %v362, %v378
  %v383 = vadd.f32 %v363, %v378
  %v384 = vadd.f32 %v364, %v378
  %v385 = vadd.f32 %v365, %v378
  %v386 = vadd.f32 %v366, %v378
  %v387 = vadd.f32 %v367, %v378
  %v388 = vadd.f32 %v368, %v378
  %v389 = vadd.f32 %v369, %v378
  %v390 = vadd.f32 %v370, %v378
  %v391 = vadd.f32 %v371, %v378
  %v392 = vadd.f32 %v372, %v378
  %v393 = vadd.f32 %v373, %v378
  %v394 = vadd.f32 %v374, %v378
  %v395 = vmax.f32 %v379, 0.0
  %v396 = vmax.f32 %v380, 0.0
  %v397 = vmax.f32 %v381, 0.0
  %v398 = vmax.f32 %v382, 0.0
  %v399 = vmax.f32 %v383, 0.0
  %v400 = vmax.f32 %v384, 0.0
  %v401 = vmax.f32 %v385, 0.0
  %v402 = vmax.f32 %v386, 0.0
  %v403 = vmax.f32 %v387, 0.0
  %v404 = vmax.f32 %v388, 0.0
  %v405 = vmax.f32 %v389, 0.0
  %v406 = vmax.f32 %v390, 0.0
  %v407 = vmax.f32 %v391, 0.0
  %v408 = vmax.f32 %v392, 0.0
  %v409 = vmax.f32 %v393, 0.0
  %v410 = vmax.f32 %v394, 0.0
  %v411 = vmul.f32 %v395, %v92
  %v412 = vmul.f32 %v396, %v93
  %v413 = vmul.f32 %v397, %v94
  %v414 = vmul.f32 %v398, %v95
  %v415 = vmul.f32 %v399, %v96
  %v416 = vmul.f32 %v400, %v97
  %v417 = vmul.f32 %v401, %v98
  %v418 = vmul.f32 %v402, %v99
  %v419 = vmul.f32 %v403, %v100
  %v420 = vmul.f32 %v404, %v101
  %v421 = vmul.f32 %v405, %v102
  %v422 = vmul.f32 %v406, %v103
  %v423 = vmul.f32 %v407, %v104
  %v424 = vmul.f32 %v408, %v105
  %v425 = vmul.f32 %v409, %v106
  %v426 = vmul.f32 %v410, %v107
  %v427 = vpack.c.bf16 %v412, %v411
  %v428 = vpack.c.bf16 %v414, %v413
  %v429 = vpack.c.bf16 %v416, %v415
  %v430 = vpack.c.bf16 %v418, %v417
  %v431 = vpack.c.bf16 %v420, %v419
  %v432 = vpack.c.bf16 %v422, %v421
  %v433 = vpack.c.bf16 %v424, %v423
  %v434 = vpack.c.bf16 %v426, %v425
  %v451 = vunpack.c.l.b16 %v15
  %v452 = vunpack.c.l.b16 %v16
  %v453 = vunpack.c.l.b16 %v17
  %v454 = vunpack.c.l.b16 %v18
  %v455 = vunpack.c.l.b16 %v19
  %v456 = vunpack.c.l.b16 %v20
  %v457 = vunpack.c.l.b16 %v21
  %v458 = vunpack.c.l.b16 %v22
  %v459 = vunpack.c.l.b16 %v23
  %v460 = vunpack.c.l.b16 %v24
  %v461 = vunpack.c.l.b16 %v25
  %v462 = vunpack.c.l.b16 %v26
  %v463 = vunpack.c.l.b16 %v27
  %v464 = vunpack.c.l.b16 %v28
  %v465 = vunpack.c.l.b16 %v29
  %v466 = vunpack.c.l.b16 %v30
  %v467 = vpack.c.b16 %v452, %v451
  %v468 = vpack.c.b16 %v454, %v453
  %v469 = vpack.c.b16 %v456, %v455
  %v470 = vpack.c.b16 %v458, %v457
  %v471 = vpack.c.b16 %v460, %v459
  %v472 = vpack.c.b16 %v462, %v461
  %v473 = vpack.c.b16 %v464, %v463
  %v474 = vpack.c.b16 %v466, %v465
  %483 = vmatprep.subr.bf16.mxu0 0
  %484 = vmatpush1.bf16.msra.mxu0 %v467
  %485 = vmatprep.subr.bf16.mxu0 0
  %486 = vmatpush1.bf16.msra.mxu0 %v468
  %487 = vmatprep.subr.bf16.mxu0 0
  %488 = vmatpush1.bf16.msra.mxu0 %v469
  %489 = vmatprep.subr.bf16.mxu0 0
  %490 = vmatpush1.bf16.msra.mxu0 %v470
  %491 = vmatprep.subr.bf16.mxu0 0
  %492 = vmatpush1.bf16.msra.mxu0 %v471
  %493 = vmatprep.subr.bf16.mxu0 0
  %494 = vmatpush1.bf16.msra.mxu0 %v472
  %495 = vmatprep.subr.bf16.mxu0 0
  %496 = vmatpush1.bf16.msra.mxu0 %v473
  %497 = vmatprep.subr.bf16.mxu0 0
  %498 = vmatpush1.bf16.msra.mxu0 %v474
  %499 = vmatprep.subr.bf16.mxu0 0
  %500 = vmatpush1.bf16.msra.mxu0 0
  %501 = vmatprep.subr.bf16.mxu0 0
  %502 = vmatpush1.bf16.msra.mxu0 0
  %503 = vmatprep.subr.bf16.mxu0 0
  %504 = vmatpush1.bf16.msra.mxu0 0
  %505 = vmatprep.subr.bf16.mxu0 0
  %506 = vmatpush1.bf16.msra.mxu0 0
  %507 = vmatprep.subr.bf16.mxu0 0
  %508 = vmatpush1.bf16.msra.mxu0 0
  %509 = vmatprep.subr.bf16.mxu0 0
  %510 = vmatpush1.bf16.msra.mxu0 0
  %511 = vmatprep.subr.bf16.mxu0 0
  %512 = vmatpush1.bf16.msra.mxu0 0
  %513 = vmatprep.subr.bf16.mxu0 0
  %514 = vmatpush1.bf16.msra.mxu0 0
  %515 = vmatprep.mubr.bf16.mxu0 0
  %516 = vmatmul.mubr.bf16.gmra.mrb[0].mxu0 %v427
  %v517 = vpop.f32.mrb[0].mxu0
  %v518 = vadd.f32 0.0, %v517
  %v519 = vpop.f32.mrb[0].mxu0
  %v520 = vpop.f32.mrb[0].mxu0
  %v521 = vadd.f32 0.0, %v520
  %v522 = vpop.f32.mrb[0].mxu0
  %523 = vmatprep.mubr.bf16.mxu0 0
  %524 = vmatmul.mubr.bf16.gmra.mrb[0].mxu0 %v428
  %v525 = vpop.f32.mrb[0].mxu0
  %v526 = vadd.f32 0.0, %v525
  %v527 = vpop.f32.mrb[0].mxu0
  %v528 = vpop.f32.mrb[0].mxu0
  %v529 = vadd.f32 0.0, %v528
  %v530 = vpop.f32.mrb[0].mxu0
  %531 = vmatprep.mubr.bf16.mxu0 0
  %532 = vmatmul.mubr.bf16.gmra.mrb[0].mxu0 %v429
  %v533 = vpop.f32.mrb[0].mxu0
  %v534 = vadd.f32 0.0, %v533
  %v535 = vpop.f32.mrb[0].mxu0
  %v536 = vpop.f32.mrb[0].mxu0
  %v537 = vadd.f32 0.0, %v536
  %v538 = vpop.f32.mrb[0].mxu0
  %539 = vmatprep.mubr.bf16.mxu0 0
  %540 = vmatmul.mubr.bf16.gmra.mrb[0].mxu0 %v430
  %v541 = vpop.f32.mrb[0].mxu0
  %v542 = vadd.f32 0.0, %v541
  %v543 = vpop.f32.mrb[0].mxu0
  %v544 = vpop.f32.mrb[0].mxu0
  %v545 = vadd.f32 0.0, %v544
  %v546 = vpop.f32.mrb[0].mxu0
  %547 = vmatprep.mubr.bf16.mxu0 0
  %548 = vmatmul.mubr.bf16.gmra.mrb[0].mxu0 %v431
  %v549 = vpop.f32.mrb[0].mxu0
  %v550 = vadd.f32 0.0, %v549
  %v551 = vpop.f32.mrb[0].mxu0
  %v552 = vpop.f32.mrb[0].mxu0
  %v553 = vadd.f32 0.0, %v552
  %v554 = vpop.f32.mrb[0].mxu0
  %555 = vmatprep.mubr.bf16.mxu0 0
  %556 = vmatmul.mubr.bf16.gmra.mrb[0].mxu0 %v432
  %v557 = vpop.f32.mrb[0].mxu0
  %v558 = vadd.f32 0.0, %v557
  %v559 = vpop.f32.mrb[0].mxu0
  %v560 = vpop.f32.mrb[0].mxu0
  %v561 = vadd.f32 0.0, %v560
  %v562 = vpop.f32.mrb[0].mxu0
  %563 = vmatprep.mubr.bf16.mxu0 0
  %564 = vmatmul.mubr.bf16.gmra.mrb[0].mxu0 %v433
  %v565 = vpop.f32.mrb[0].mxu0
  %v566 = vadd.f32 0.0, %v565
  %v567 = vpop.f32.mrb[0].mxu0
  %v568 = vpop.f32.mrb[0].mxu0
  %v569 = vadd.f32 0.0, %v568
  %v570 = vpop.f32.mrb[0].mxu0
  %571 = vmatprep.mubr.bf16.mxu0 0
  %572 = vmatmul.mubr.bf16.gmra.mrb[0].mxu0 %v434
  %v573 = vpop.f32.mrb[0].mxu0
  %v574 = vadd.f32 0.0, %v573
  %v575 = vpop.f32.mrb[0].mxu0
  %v576 = vpop.f32.mrb[0].mxu0
  %v577 = vadd.f32 0.0, %v576
  %v578 = vpop.f32.mrb[0].mxu0
  %579 = vdwg.mxu0
  %vm580 = vcmask 523264
  %v581 = vsel %vm580, %v518, 0.0
  %v582 = vsel %vm580, %v521, 0.0
  %v583 = vadd.f32 %v581, %v582
  %v584 = vsel %vm580, %v526, 0.0
  %v585 = vadd.f32 %v583, %v584
  %v586 = vsel %vm580, %v529, 0.0
  %v587 = vadd.f32 %v585, %v586
  %v588 = vsel %vm580, %v534, 0.0
  %v589 = vadd.f32 %v587, %v588
  %v590 = vsel %vm580, %v537, 0.0
  %v591 = vadd.f32 %v589, %v590
  %v592 = vsel %vm580, %v542, 0.0
  %v593 = vadd.f32 %v591, %v592
  %v594 = vsel %vm580, %v545, 0.0
  %v595 = vadd.f32 %v593, %v594
  %v596 = vsel %vm580, %v550, 0.0
  %v597 = vadd.f32 %v595, %v596
  %v598 = vsel %vm580, %v553, 0.0
  %v599 = vadd.f32 %v597, %v598
  %v600 = vsel %vm580, %v558, 0.0
  %v601 = vadd.f32 %v599, %v600
  %v602 = vsel %vm580, %v561, 0.0
  %v603 = vadd.f32 %v601, %v602
  %v604 = vsel %vm580, %v566, 0.0
  %v605 = vadd.f32 %v603, %v604
  %v606 = vsel %vm580, %v569, 0.0
  %v607 = vadd.f32 %v605, %v606
  %v608 = vsel %vm580, %v574, 0.0
  %v609 = vadd.f32 %v607, %v608
  %v610 = vsel %vm580, %v577, 0.0
  %v611 = vadd.f32 %v609, %v610
  %v612 = vrot.slane %v611, 4
  %v613 = vadd.f32 %v611, %v612
  %v614 = vrot.slane %v613, 2
  %v615 = vadd.f32 %v613, %v614
  %v616 = vrot.slane %v615, 1
  %v617 = vadd.f32 %v615, %v616
  %v618 = vmul.f32 %v617, 0.125
  %v619 = vsub.f32 %v518, %v618
  %v620 = vsub.f32 %v521, %v618
  %v621 = vsub.f32 %v526, %v618
  %v622 = vsub.f32 %v529, %v618
  %v623 = vsub.f32 %v534, %v618
  %v624 = vsub.f32 %v537, %v618
  %v625 = vsub.f32 %v542, %v618
  %v626 = vsub.f32 %v545, %v618
  %v627 = vsub.f32 %v550, %v618
  %v628 = vsub.f32 %v553, %v618
  %v629 = vsub.f32 %v558, %v618
  %v630 = vsub.f32 %v561, %v618
  %v631 = vsub.f32 %v566, %v618
  %v632 = vsub.f32 %v569, %v618
  %v633 = vsub.f32 %v574, %v618
  %v634 = vsub.f32 %v577, %v618
  %v635 = vmul.f32 %v619, %v92
  %v636 = vmul.f32 %v620, %v93
  %v637 = vmul.f32 %v621, %v94
  %v638 = vmul.f32 %v622, %v95
  %v639 = vmul.f32 %v623, %v96
  %v640 = vmul.f32 %v624, %v97
  %v641 = vmul.f32 %v625, %v98
  %v642 = vmul.f32 %v626, %v99
  %v643 = vmul.f32 %v627, %v100
  %v644 = vmul.f32 %v628, %v101
  %v645 = vmul.f32 %v629, %v102
  %v646 = vmul.f32 %v630, %v103
  %v647 = vmul.f32 %v631, %v104
  %v648 = vmul.f32 %v632, %v105
  %v649 = vmul.f32 %v633, %v106
  %v650 = vmul.f32 %v634, %v107
  %v651 = vmul.f32 %v635, %v635
  %v652 = vmul.f32 %v636, %v636
  %v653 = vmul.f32 %v637, %v637
  %v654 = vmul.f32 %v638, %v638
  %v655 = vmul.f32 %v639, %v639
  %v656 = vmul.f32 %v640, %v640
  %v657 = vmul.f32 %v641, %v641
  %v658 = vmul.f32 %v642, %v642
  %v659 = vmul.f32 %v643, %v643
  %v660 = vmul.f32 %v644, %v644
  %v661 = vmul.f32 %v645, %v645
  %v662 = vmul.f32 %v646, %v646
  %v663 = vmul.f32 %v647, %v647
  %v664 = vmul.f32 %v648, %v648
  %v665 = vmul.f32 %v649, %v649
  %v666 = vmul.f32 %v650, %v650
  %v667 = vsel %vm580, %v651, 0.0
  %v668 = vsel %vm580, %v652, 0.0
  %v669 = vadd.f32 %v667, %v668
  %v670 = vsel %vm580, %v653, 0.0
  %v671 = vadd.f32 %v669, %v670
  %v672 = vsel %vm580, %v654, 0.0
  %v673 = vadd.f32 %v671, %v672
  %v674 = vsel %vm580, %v655, 0.0
  %v675 = vadd.f32 %v673, %v674
  %v676 = vsel %vm580, %v656, 0.0
  %v677 = vadd.f32 %v675, %v676
  %v678 = vsel %vm580, %v657, 0.0
  %v679 = vadd.f32 %v677, %v678
  %v680 = vsel %vm580, %v658, 0.0
  %v681 = vadd.f32 %v679, %v680
  %v682 = vsel %vm580, %v659, 0.0
  %v683 = vadd.f32 %v681, %v682
  %v684 = vsel %vm580, %v660, 0.0
  %v685 = vadd.f32 %v683, %v684
  %v686 = vsel %vm580, %v661, 0.0
  %v687 = vadd.f32 %v685, %v686
  %v688 = vsel %vm580, %v662, 0.0
  %v689 = vadd.f32 %v687, %v688
  %v690 = vsel %vm580, %v663, 0.0
  %v691 = vadd.f32 %v689, %v690
  %v692 = vsel %vm580, %v664, 0.0
  %v693 = vadd.f32 %v691, %v692
  %v694 = vsel %vm580, %v665, 0.0
  %v695 = vadd.f32 %v693, %v694
  %v696 = vsel %vm580, %v666, 0.0
  %v697 = vadd.f32 %v695, %v696
  %v698 = vrot.slane %v697, 4
  %v699 = vadd.f32 %v697, %v698
  %v700 = vrot.slane %v699, 2
  %v701 = vadd.f32 %v699, %v700
  %v702 = vrot.slane %v701, 1
  %v703 = vadd.f32 %v701, %v702
  %v704 = vmul.f32 %v703, 0.125
  %v705 = vadd.f32 %v704, 1e-05
  %v706 = vrsqrt.pop %v705
  %v707 = vmul.f32 %v42, %v706
  %v708 = vlaneseq
  %v709 = vshrl.u32 %v708, 7
  %v710 = vsub.s32 2, %v709
  %v711 = vrot.slane %v707, %v710
  %v712 = vmul.f32 %v635, %v711
  %v713 = vmul.f32 %v636, %v711
  %v714 = vmul.f32 %v637, %v711
  %v715 = vmul.f32 %v638, %v711
  %v716 = vmul.f32 %v639, %v711
  %v717 = vmul.f32 %v640, %v711
  %v718 = vmul.f32 %v641, %v711
  %v719 = vmul.f32 %v642, %v711
  %v720 = vmul.f32 %v643, %v711
  %v721 = vmul.f32 %v644, %v711
  %v722 = vmul.f32 %v645, %v711
  %v723 = vmul.f32 %v646, %v711
  %v724 = vmul.f32 %v647, %v711
  %v725 = vmul.f32 %v648, %v711
  %v726 = vmul.f32 %v649, %v711
  %v727 = vmul.f32 %v650, %v711
  %v728 = vlaneseq
  %v729 = vshrl.u32 %v728, 7
  %v730 = vsub.s32 3, %v729
  %v731 = vrot.slane %v42, %v730
  %v732 = vadd.f32 %v712, %v731
  %v733 = vadd.f32 %v713, %v731
  %v734 = vadd.f32 %v714, %v731
  %v735 = vadd.f32 %v715, %v731
  %v736 = vadd.f32 %v716, %v731
  %v737 = vadd.f32 %v717, %v731
  %v738 = vadd.f32 %v718, %v731
  %v739 = vadd.f32 %v719, %v731
  %v740 = vadd.f32 %v720, %v731
  %v741 = vadd.f32 %v721, %v731
  %v742 = vadd.f32 %v722, %v731
  %v743 = vadd.f32 %v723, %v731
  %v744 = vadd.f32 %v724, %v731
  %v745 = vadd.f32 %v725, %v731
  %v746 = vadd.f32 %v726, %v731
  %v747 = vadd.f32 %v727, %v731
  %v748 = vmax.f32 %v732, 0.0
  %v749 = vmax.f32 %v733, 0.0
  %v750 = vmax.f32 %v734, 0.0
  %v751 = vmax.f32 %v735, 0.0
  %v752 = vmax.f32 %v736, 0.0
  %v753 = vmax.f32 %v737, 0.0
  %v754 = vmax.f32 %v738, 0.0
  %v755 = vmax.f32 %v739, 0.0
  %v756 = vmax.f32 %v740, 0.0
  %v757 = vmax.f32 %v741, 0.0
  %v758 = vmax.f32 %v742, 0.0
  %v759 = vmax.f32 %v743, 0.0
  %v760 = vmax.f32 %v744, 0.0
  %v761 = vmax.f32 %v745, 0.0
  %v762 = vmax.f32 %v746, 0.0
  %v763 = vmax.f32 %v747, 0.0
  %v764 = vmul.f32 %v748, %v92
  %v765 = vmul.f32 %v749, %v93
  %v766 = vmul.f32 %v750, %v94
  %v767 = vmul.f32 %v751, %v95
  %v768 = vmul.f32 %v752, %v96
  %v769 = vmul.f32 %v753, %v97
  %v770 = vmul.f32 %v754, %v98
  %v771 = vmul.f32 %v755, %v99
  %v772 = vmul.f32 %v756, %v100
  %v773 = vmul.f32 %v757, %v101
  %v774 = vmul.f32 %v758, %v102
  %v775 = vmul.f32 %v759, %v103
  %v776 = vmul.f32 %v760, %v104
  %v777 = vmul.f32 %v761, %v105
  %v778 = vmul.f32 %v762, %v106
  %v779 = vmul.f32 %v763, %v107
  %v780 = vpack.c.bf16 %v765, %v764
  %v781 = vpack.c.bf16 %v767, %v766
  %v782 = vpack.c.bf16 %v769, %v768
  %v783 = vpack.c.bf16 %v771, %v770
  %v784 = vpack.c.bf16 %v773, %v772
  %v785 = vpack.c.bf16 %v775, %v774
  %v786 = vpack.c.bf16 %v777, %v776
  %v787 = vpack.c.bf16 %v779, %v778
  %v796 = vunpack.c.l.b16 %v31
  %v797 = vunpack.c.l.b16 %v32
  %v798 = vunpack.c.l.b16 %v33
  %v799 = vunpack.c.l.b16 %v34
  %v800 = vunpack.c.l.b16 %v35
  %v801 = vunpack.c.l.b16 %v36
  %v802 = vunpack.c.l.b16 %v37
  %v803 = vunpack.c.l.b16 %v38
  %v804 = vpack.c.b16 %v797, %v796
  %v805 = vpack.c.b16 %v799, %v798
  %v806 = vpack.c.b16 %v801, %v800
  %v807 = vpack.c.b16 %v803, %v802
  %v813 = vsel %vm580, %v780, 0
  %v816 = vsel %vm580, %v781, 0
  %v819 = vsel %vm580, %v782, 0
  %v822 = vsel %vm580, %v783, 0
  %v825 = vsel %vm580, %v784, 0
  %v828 = vsel %vm580, %v785, 0
  %v831 = vsel %vm580, %v786, 0
  %v834 = vsel %vm580, %v787, 0
  %836 = vmatprep.subr.bf16.mxu0 0
  %837 = vmatpush1.bf16.msra.mxu0 %v804
  %838 = vmatprep.subr.bf16.mxu0 0
  %839 = vmatpush1.bf16.msra.mxu0 %v805
  %840 = vmatprep.subr.bf16.mxu0 0
  %841 = vmatpush1.bf16.msra.mxu0 %v806
  %842 = vmatprep.subr.bf16.mxu0 0
  %843 = vmatpush1.bf16.msra.mxu0 %v807
  %844 = vmatprep.subr.bf16.mxu0 0
  %845 = vmatpush1.bf16.msra.mxu0 0
  %846 = vmatprep.subr.bf16.mxu0 0
  %847 = vmatpush1.bf16.msra.mxu0 0
  %848 = vmatprep.subr.bf16.mxu0 0
  %849 = vmatpush1.bf16.msra.mxu0 0
  %850 = vmatprep.subr.bf16.mxu0 0
  %851 = vmatpush1.bf16.msra.mxu0 0
  %852 = vmatprep.subr.bf16.mxu0 0
  %853 = vmatpush1.bf16.msra.mxu0 0
  %854 = vmatprep.subr.bf16.mxu0 0
  %855 = vmatpush1.bf16.msra.mxu0 0
  %856 = vmatprep.subr.bf16.mxu0 0
  %857 = vmatpush1.bf16.msra.mxu0 0
  %858 = vmatprep.subr.bf16.mxu0 0
  %859 = vmatpush1.bf16.msra.mxu0 0
  %860 = vmatprep.subr.bf16.mxu0 0
  %861 = vmatpush1.bf16.msra.mxu0 0
  %862 = vmatprep.subr.bf16.mxu0 0
  %863 = vmatpush1.bf16.msra.mxu0 0
  %864 = vmatprep.subr.bf16.mxu0 0
  %865 = vmatpush1.bf16.msra.mxu0 0
  %866 = vmatprep.subr.bf16.mxu0 0
  %867 = vmatpush1.bf16.msra.mxu0 0
  %868 = vmatprep.mubr.bf16.mxu0 0
  %869 = vmatmul.mubr.bf16.gmra.mrb[0].mxu0 %v813
  %v870 = vpop.f32.mrb[0].mxu0
  %v871 = vadd.f32 0.0, %v870
  %v872 = vpop.f32.mrb[0].mxu0
  %v873 = vpop.f32.mrb[0].mxu0
  %v874 = vadd.f32 0.0, %v873
  %v875 = vpop.f32.mrb[0].mxu0
  %876 = vmatprep.mubr.bf16.mxu0 0
  %877 = vmatmul.mubr.bf16.gmra.mrb[0].mxu0 %v816
  %v878 = vpop.f32.mrb[0].mxu0
  %v879 = vadd.f32 0.0, %v878
  %v880 = vpop.f32.mrb[0].mxu0
  %v881 = vpop.f32.mrb[0].mxu0
  %v882 = vadd.f32 0.0, %v881
  %v883 = vpop.f32.mrb[0].mxu0
  %884 = vmatprep.mubr.bf16.mxu0 0
  %885 = vmatmul.mubr.bf16.gmra.mrb[0].mxu0 %v819
  %v886 = vpop.f32.mrb[0].mxu0
  %v887 = vadd.f32 0.0, %v886
  %v888 = vpop.f32.mrb[0].mxu0
  %v889 = vpop.f32.mrb[0].mxu0
  %v890 = vadd.f32 0.0, %v889
  %v891 = vpop.f32.mrb[0].mxu0
  %892 = vmatprep.mubr.bf16.mxu0 0
  %893 = vmatmul.mubr.bf16.gmra.mrb[0].mxu0 %v822
  %v894 = vpop.f32.mrb[0].mxu0
  %v895 = vadd.f32 0.0, %v894
  %v896 = vpop.f32.mrb[0].mxu0
  %v897 = vpop.f32.mrb[0].mxu0
  %v898 = vadd.f32 0.0, %v897
  %v899 = vpop.f32.mrb[0].mxu0
  %900 = vmatprep.mubr.bf16.mxu0 0
  %901 = vmatmul.mubr.bf16.gmra.mrb[0].mxu0 %v825
  %v902 = vpop.f32.mrb[0].mxu0
  %v903 = vadd.f32 0.0, %v902
  %v904 = vpop.f32.mrb[0].mxu0
  %v905 = vpop.f32.mrb[0].mxu0
  %v906 = vadd.f32 0.0, %v905
  %v907 = vpop.f32.mrb[0].mxu0
  %908 = vmatprep.mubr.bf16.mxu0 0
  %909 = vmatmul.mubr.bf16.gmra.mrb[0].mxu0 %v828
  %v910 = vpop.f32.mrb[0].mxu0
  %v911 = vadd.f32 0.0, %v910
  %v912 = vpop.f32.mrb[0].mxu0
  %v913 = vpop.f32.mrb[0].mxu0
  %v914 = vadd.f32 0.0, %v913
  %v915 = vpop.f32.mrb[0].mxu0
  %916 = vmatprep.mubr.bf16.mxu0 0
  %917 = vmatmul.mubr.bf16.gmra.mrb[0].mxu0 %v831
  %v918 = vpop.f32.mrb[0].mxu0
  %v919 = vadd.f32 0.0, %v918
  %v920 = vpop.f32.mrb[0].mxu0
  %v921 = vpop.f32.mrb[0].mxu0
  %v922 = vadd.f32 0.0, %v921
  %v923 = vpop.f32.mrb[0].mxu0
  %924 = vmatprep.mubr.bf16.mxu0 0
  %925 = vmatmul.mubr.bf16.gmra.mrb[0].mxu0 %v834
  %v926 = vpop.f32.mrb[0].mxu0
  %v927 = vadd.f32 0.0, %v926
  %v928 = vpop.f32.mrb[0].mxu0
  %v929 = vpop.f32.mrb[0].mxu0
  %v930 = vadd.f32 0.0, %v929
  %v931 = vpop.f32.mrb[0].mxu0
  %932 = vdwg.mxu0
  %vm933 = vcmask 261120
  %v934 = vsel %vm933, %v871, 0.0
  %v935 = vsel %vm933, %v874, 0.0
  %v936 = vadd.f32 %v934, %v935
  %v937 = vsel %vm933, %v879, 0.0
  %v938 = vadd.f32 %v936, %v937
  %v939 = vsel %vm933, %v882, 0.0
  %v940 = vadd.f32 %v938, %v939
  %v941 = vsel %vm933, %v887, 0.0
  %v942 = vadd.f32 %v940, %v941
  %v943 = vsel %vm933, %v890, 0.0
  %v944 = vadd.f32 %v942, %v943
  %v945 = vsel %vm933, %v895, 0.0
  %v946 = vadd.f32 %v944, %v945
  %v947 = vsel %vm933, %v898, 0.0
  %v948 = vadd.f32 %v946, %v947
  %v949 = vsel %vm933, %v903, 0.0
  %v950 = vadd.f32 %v948, %v949
  %v951 = vsel %vm933, %v906, 0.0
  %v952 = vadd.f32 %v950, %v951
  %v953 = vsel %vm933, %v911, 0.0
  %v954 = vadd.f32 %v952, %v953
  %v955 = vsel %vm933, %v914, 0.0
  %v956 = vadd.f32 %v954, %v955
  %v957 = vsel %vm933, %v919, 0.0
  %v958 = vadd.f32 %v956, %v957
  %v959 = vsel %vm933, %v922, 0.0
  %v960 = vadd.f32 %v958, %v959
  %v961 = vsel %vm933, %v927, 0.0
  %v962 = vadd.f32 %v960, %v961
  %v963 = vsel %vm933, %v930, 0.0
  %v964 = vadd.f32 %v962, %v963
  %v965 = vrot.slane %v964, 4
  %v966 = vadd.f32 %v964, %v965
  %v967 = vrot.slane %v966, 2
  %v968 = vadd.f32 %v966, %v967
  %v969 = vrot.slane %v968, 1
  %v970 = vadd.f32 %v968, %v969
  %v971 = vmul.f32 %v970, 0.125
  %v972 = vsub.f32 %v871, %v971
  %v973 = vsub.f32 %v874, %v971
  %v974 = vsub.f32 %v879, %v971
  %v975 = vsub.f32 %v882, %v971
  %v976 = vsub.f32 %v887, %v971
  %v977 = vsub.f32 %v890, %v971
  %v978 = vsub.f32 %v895, %v971
  %v979 = vsub.f32 %v898, %v971
  %v980 = vsub.f32 %v903, %v971
  %v981 = vsub.f32 %v906, %v971
  %v982 = vsub.f32 %v911, %v971
  %v983 = vsub.f32 %v914, %v971
  %v984 = vsub.f32 %v919, %v971
  %v985 = vsub.f32 %v922, %v971
  %v986 = vsub.f32 %v927, %v971
  %v987 = vsub.f32 %v930, %v971
  %v988 = vmul.f32 %v972, %v92
  %v989 = vmul.f32 %v973, %v93
  %v990 = vmul.f32 %v974, %v94
  %v991 = vmul.f32 %v975, %v95
  %v992 = vmul.f32 %v976, %v96
  %v993 = vmul.f32 %v977, %v97
  %v994 = vmul.f32 %v978, %v98
  %v995 = vmul.f32 %v979, %v99
  %v996 = vmul.f32 %v980, %v100
  %v997 = vmul.f32 %v981, %v101
  %v998 = vmul.f32 %v982, %v102
  %v999 = vmul.f32 %v983, %v103
  %v1000 = vmul.f32 %v984, %v104
  %v1001 = vmul.f32 %v985, %v105
  %v1002 = vmul.f32 %v986, %v106
  %v1003 = vmul.f32 %v987, %v107
  %v1004 = vmul.f32 %v988, %v988
  %v1005 = vmul.f32 %v989, %v989
  %v1006 = vmul.f32 %v990, %v990
  %v1007 = vmul.f32 %v991, %v991
  %v1008 = vmul.f32 %v992, %v992
  %v1009 = vmul.f32 %v993, %v993
  %v1010 = vmul.f32 %v994, %v994
  %v1011 = vmul.f32 %v995, %v995
  %v1012 = vmul.f32 %v996, %v996
  %v1013 = vmul.f32 %v997, %v997
  %v1014 = vmul.f32 %v998, %v998
  %v1015 = vmul.f32 %v999, %v999
  %v1016 = vmul.f32 %v1000, %v1000
  %v1017 = vmul.f32 %v1001, %v1001
  %v1018 = vmul.f32 %v1002, %v1002
  %v1019 = vmul.f32 %v1003, %v1003
  %v1020 = vsel %vm933, %v1004, 0.0
  %v1021 = vsel %vm933, %v1005, 0.0
  %v1022 = vadd.f32 %v1020, %v1021
  %v1023 = vsel %vm933, %v1006, 0.0
  %v1024 = vadd.f32 %v1022, %v1023
  %v1025 = vsel %vm933, %v1007, 0.0
  %v1026 = vadd.f32 %v1024, %v1025
  %v1027 = vsel %vm933, %v1008, 0.0
  %v1028 = vadd.f32 %v1026, %v1027
  %v1029 = vsel %vm933, %v1009, 0.0
  %v1030 = vadd.f32 %v1028, %v1029
  %v1031 = vsel %vm933, %v1010, 0.0
  %v1032 = vadd.f32 %v1030, %v1031
  %v1033 = vsel %vm933, %v1011, 0.0
  %v1034 = vadd.f32 %v1032, %v1033
  %v1035 = vsel %vm933, %v1012, 0.0
  %v1036 = vadd.f32 %v1034, %v1035
  %v1037 = vsel %vm933, %v1013, 0.0
  %v1038 = vadd.f32 %v1036, %v1037
  %v1039 = vsel %vm933, %v1014, 0.0
  %v1040 = vadd.f32 %v1038, %v1039
  %v1041 = vsel %vm933, %v1015, 0.0
  %v1042 = vadd.f32 %v1040, %v1041
  %v1043 = vsel %vm933, %v1016, 0.0
  %v1044 = vadd.f32 %v1042, %v1043
  %v1045 = vsel %vm933, %v1017, 0.0
  %v1046 = vadd.f32 %v1044, %v1045
  %v1047 = vsel %vm933, %v1018, 0.0
  %v1048 = vadd.f32 %v1046, %v1047
  %v1049 = vsel %vm933, %v1019, 0.0
  %v1050 = vadd.f32 %v1048, %v1049
  %v1051 = vrot.slane %v1050, 4
  %v1052 = vadd.f32 %v1050, %v1051
  %v1053 = vrot.slane %v1052, 2
  %v1054 = vadd.f32 %v1052, %v1053
  %v1055 = vrot.slane %v1054, 1
  %v1056 = vadd.f32 %v1054, %v1055
  %v1057 = vmul.f32 %v1056, 0.125
  %v1058 = vadd.f32 %v1057, 1e-05
  %v1059 = vrsqrt.pop %v1058
  %v1060 = vmul.f32 %v42, %v1059
  %v1061 = vlaneseq
  %v1062 = vshrl.u32 %v1061, 7
  %v1063 = vsub.s32 4, %v1062
  %v1064 = vrot.slane %v1060, %v1063
  %v1065 = vmul.f32 %v988, %v1064
  %v1066 = vmul.f32 %v989, %v1064
  %v1067 = vmul.f32 %v990, %v1064
  %v1068 = vmul.f32 %v991, %v1064
  %v1069 = vmul.f32 %v992, %v1064
  %v1070 = vmul.f32 %v993, %v1064
  %v1071 = vmul.f32 %v994, %v1064
  %v1072 = vmul.f32 %v995, %v1064
  %v1073 = vmul.f32 %v996, %v1064
  %v1074 = vmul.f32 %v997, %v1064
  %v1075 = vmul.f32 %v998, %v1064
  %v1076 = vmul.f32 %v999, %v1064
  %v1077 = vmul.f32 %v1000, %v1064
  %v1078 = vmul.f32 %v1001, %v1064
  %v1079 = vmul.f32 %v1002, %v1064
  %v1080 = vmul.f32 %v1003, %v1064
  %v1081 = vlaneseq
  %v1082 = vshrl.u32 %v1081, 7
  %v1083 = vsub.s32 5, %v1082
  %v1084 = vrot.slane %v42, %v1083
  %v1085 = vadd.f32 %v1065, %v1084
  %v1086 = vadd.f32 %v1066, %v1084
  %v1087 = vadd.f32 %v1067, %v1084
  %v1088 = vadd.f32 %v1068, %v1084
  %v1089 = vadd.f32 %v1069, %v1084
  %v1090 = vadd.f32 %v1070, %v1084
  %v1091 = vadd.f32 %v1071, %v1084
  %v1092 = vadd.f32 %v1072, %v1084
  %v1093 = vadd.f32 %v1073, %v1084
  %v1094 = vadd.f32 %v1074, %v1084
  %v1095 = vadd.f32 %v1075, %v1084
  %v1096 = vadd.f32 %v1076, %v1084
  %v1097 = vadd.f32 %v1077, %v1084
  %v1098 = vadd.f32 %v1078, %v1084
  %v1099 = vadd.f32 %v1079, %v1084
  %v1100 = vadd.f32 %v1080, %v1084
  %v1101 = vmax.f32 %v1085, 0.0
  %v1102 = vmax.f32 %v1086, 0.0
  %v1103 = vmax.f32 %v1087, 0.0
  %v1104 = vmax.f32 %v1088, 0.0
  %v1105 = vmax.f32 %v1089, 0.0
  %v1106 = vmax.f32 %v1090, 0.0
  %v1107 = vmax.f32 %v1091, 0.0
  %v1108 = vmax.f32 %v1092, 0.0
  %v1109 = vmax.f32 %v1093, 0.0
  %v1110 = vmax.f32 %v1094, 0.0
  %v1111 = vmax.f32 %v1095, 0.0
  %v1112 = vmax.f32 %v1096, 0.0
  %v1113 = vmax.f32 %v1097, 0.0
  %v1114 = vmax.f32 %v1098, 0.0
  %v1115 = vmax.f32 %v1099, 0.0
  %v1116 = vmax.f32 %v1100, 0.0
  %v1117 = vmul.f32 %v1101, %v92
  %v1118 = vmul.f32 %v1102, %v93
  %v1119 = vmul.f32 %v1103, %v94
  %v1120 = vmul.f32 %v1104, %v95
  %v1121 = vmul.f32 %v1105, %v96
  %v1122 = vmul.f32 %v1106, %v97
  %v1123 = vmul.f32 %v1107, %v98
  %v1124 = vmul.f32 %v1108, %v99
  %v1125 = vmul.f32 %v1109, %v100
  %v1126 = vmul.f32 %v1110, %v101
  %v1127 = vmul.f32 %v1111, %v102
  %v1128 = vmul.f32 %v1112, %v103
  %v1129 = vmul.f32 %v1113, %v104
  %v1130 = vmul.f32 %v1114, %v105
  %v1131 = vmul.f32 %v1115, %v106
  %v1132 = vmul.f32 %v1116, %v107
  %v1133 = vpack.c.bf16 %v1118, %v1117
  %v1134 = vpack.c.bf16 %v1120, %v1119
  %v1135 = vpack.c.bf16 %v1122, %v1121
  %v1136 = vpack.c.bf16 %v1124, %v1123
  %v1137 = vpack.c.bf16 %v1126, %v1125
  %v1138 = vpack.c.bf16 %v1128, %v1127
  %v1139 = vpack.c.bf16 %v1130, %v1129
  %v1140 = vpack.c.bf16 %v1132, %v1131
  %1142 = vset.pattern.permute.xlu0 0
  %1143 = vperm.xlu0 %1142, %v42
  %v1144 = vpop.permute.xlu0 %1143
  %v1145 = vrot.slane %v1144, 6
  %v1148 = vsel %vm933, %v39, 0
  %v1151 = vsel %vm933, %v1133, 0
  %v1154 = vsel %vm933, %v1134, 0
  %v1157 = vsel %vm933, %v1135, 0
  %v1160 = vsel %vm933, %v1136, 0
  %v1163 = vsel %vm933, %v1137, 0
  %v1166 = vsel %vm933, %v1138, 0
  %v1169 = vsel %vm933, %v1139, 0
  %v1172 = vsel %vm933, %v1140, 0
  %1174 = vmatprep.subr.bf16.mxu0 0
  %1175 = vmatpush1.bf16.xpose.msra.mxu0 %v1151
  %1176 = vmatprep.subr.bf16.mxu0 0
  %1177 = vmatpush1.bf16.xpose.msra.mxu0 %v1154
  %1178 = vmatprep.subr.bf16.mxu0 0
  %1179 = vmatpush1.bf16.xpose.msra.mxu0 %v1157
  %1180 = vmatprep.subr.bf16.mxu0 0
  %1181 = vmatpush1.bf16.xpose.msra.mxu0 %v1160
  %1182 = vmatprep.subr.bf16.mxu0 0
  %1183 = vmatpush1.bf16.xpose.msra.mxu0 %v1163
  %1184 = vmatprep.subr.bf16.mxu0 0
  %1185 = vmatpush1.bf16.xpose.msra.mxu0 %v1166
  %1186 = vmatprep.subr.bf16.mxu0 0
  %1187 = vmatpush1.bf16.xpose.msra.mxu0 %v1169
  %1188 = vmatprep.subr.bf16.mxu0 0
  %1189 = vmatpush1.bf16.xpose.msra.mxu0 %v1172
  %1190 = vmatprep.subr.bf16.mxu0 0
  %1191 = vmatpush1.bf16.xpose.msra.mxu0 0
  %1192 = vmatprep.subr.bf16.mxu0 0
  %1193 = vmatpush1.bf16.xpose.msra.mxu0 0
  %1194 = vmatprep.subr.bf16.mxu0 0
  %1195 = vmatpush1.bf16.xpose.msra.mxu0 0
  %1196 = vmatprep.subr.bf16.mxu0 0
  %1197 = vmatpush1.bf16.xpose.msra.mxu0 0
  %1198 = vmatprep.subr.bf16.mxu0 0
  %1199 = vmatpush1.bf16.xpose.msra.mxu0 0
  %1200 = vmatprep.subr.bf16.mxu0 0
  %1201 = vmatpush1.bf16.xpose.msra.mxu0 0
  %1202 = vmatprep.subr.bf16.mxu0 0
  %1203 = vmatpush1.bf16.xpose.msra.mxu0 0
  %1204 = vmatprep.subr.bf16.mxu0 0
  %1205 = vmatpush1.bf16.xpose.msra.mxu0 0
  %1206 = vmatprep.mubr.bf16.mxu0 0
  %1207 = vmatmul.mubr.bf16.gmra.mrb[0].mxu0 %v1148
  %v1208 = vpop.f32.mrb[0].mxu0
  %v1209 = vadd.f32 %v1145, %v1208
  %v1210 = vpop.f32.mrb[0].mxu0
  %v1211 = vpop.f32.mrb[0].mxu0
  %v1212 = vpop.f32.mrb[0].mxu0
  %1213 = vdwg.mxu0
  %v1214 = vxor.u32 %v1209, 2147483648
  %v1215 = vmul.f32 %v1214, 1.442695
  %v1216 = vpow.pop %v1215
  %v1217 = vadd.f32 %v1216, 1.0
  %v1218 = vrcp.pop %v1217
  %v1219 = vmul.f32 1.0, %v1218
  %1220 = vst [vmem:[%s3] sm:$0x1] %v1219
  // Predicated region
  $region14: #{binary_classifier_v3.1} parent=0 // pred_check
    _
  $region15: #{binary_classifier_v3.1} parent=0 // pred_check_branch
    %1222 = sbr.rel (0) target = $region17
  $region16: #{binary_classifier_v3.1} parent=0 // pred_region
    _
  $region17: #{binary_classifier_v3.1} parent=0 // pred_fallthru
    _
  // Predicated region
  $region18: #{binary_classifier_v3.1} parent=0 // pred_check
    _
  $region19: #{binary_classifier_v3.1} parent=0 // pred_check_branch
    %1224 = sbr.rel (0) target = $region21
  $region20: #{binary_classifier_v3.1} parent=0 // pred_region
    _
  $region21: #{binary_classifier_v3.1} parent=0 // pred_fallthru
    _

</llo_original>
